<compile_context>
chip_gen: v7x
topology: tpu7x:2x2x1
jax: 0.10.0
libtpu: 0.0.40
codegen_flags: <defaults>
</compile_context>

<pallas_src>
import numpy as np
import jax
import jax.numpy as jnp
from jax.experimental import pallas as pl
from jax.experimental.pallas import tpu as pltpu

LOSS_WEIGHT1 = 0.5
LOSS_WEIGHT2 = 100.0
PSNR_SCALE = 10.0 / np.log(10.0)
EPS = 1e-8


def _mix_loss_kernel(pred_ref, targ_ref, w1_ref, b1_ref, w2_ref, out_ref, x_ref):
    # pred_ref / targ_ref: (N, D) f32.  x_ref: (2N, D) f32 VMEM scratch.
    n = pred_ref.shape[0]
    pred = pred_ref[...]
    targ = targ_ref[...]

    # ---- PSNR-style loss: f32 VPU path, 2-D keepdims reductions. ----
    diff = pred - targ
    mse = jnp.mean(diff * diff, axis=-1, keepdims=True)                 # (N, 1)
    loss1 = LOSS_WEIGHT1 * PSNR_SCALE * jnp.mean(jnp.log(mse + EPS))

    # ---- Feature-MSE loss (surrogate for CLIP+MLP features). ----
    # Stage the stacked operand in VMEM so both branches share ONE w1 MXU pass.
    x_ref[0:n, :] = pred
    x_ref[n:2 * n, :] = targ

    h = jnp.dot(x_ref[...].astype(jnp.bfloat16), w1_ref[...],
                preferred_element_type=jnp.float32) + b1_ref[...]       # (2N, H1) f32
    h = jax.nn.gelu(h)
    # Second matmul also bf16 x bf16 with f32 accumulation; b2 cancels in
    # fx - fy, so it is not an input.  (Target branch is forward-only here;
    # stop_gradient is irrelevant.)
    feat = jnp.dot(h.astype(jnp.bfloat16), w2_ref[...],
                   preferred_element_type=jnp.float32)                  # (2N, F) f32
    dfeat = feat[:n] - feat[n:]                                         # (N, F) f32
    loss2 = LOSS_WEIGHT2 * jnp.mean(dfeat * dfeat)

    out_ref[0, 0] = loss1 + loss2


def mix_loss(pred_nchw, target_nchw, w1_bf16, b1, w2_bf16):
    n, c, h, w = pred_nchw.shape
    d = c * h * w
    pred2 = pred_nchw.reshape(n, d).astype(jnp.float32)   # reshape: no HBM copy
    targ2 = target_nchw.reshape(n, d).astype(jnp.float32)

    h1 = w1_bf16.shape[1]
    f = w2_bf16.shape[1]

    cost = pl.CostEstimate(
        flops=2 * (2 * n) * d * h1 + 2 * (2 * n) * h1 * f + 4 * n * d,
        transcendentals=(2 * n) * h1 + n,
        bytes_accessed=d * h1 * 2 + h1 * f * 2 + 2 * n * d * 4 + h1 * 4 + 4,
    )

    out = pl.pallas_call(
        _mix_loss_kernel,
        out_shape=jax.ShapeDtypeStruct((1, 1), jnp.float32),
        in_specs=[
            pl.BlockSpec((n, d), lambda: (0, 0)),
            pl.BlockSpec((n, d), lambda: (0, 0)),
            pl.BlockSpec((d, h1), lambda: (0, 0)),
            pl.BlockSpec((1, h1), lambda: (0, 0)),
            pl.BlockSpec((h1, f), lambda: (0, 0)),
        ],
        # Scalar reduction result -> SMEM output (avoids lane-sparse VMEM store).
        out_specs=pl.BlockSpec(memory_space=pltpu.MemorySpace.SMEM),
        scratch_shapes=[pltpu.VMEM((2 * n, d), jnp.float32)],
        cost_estimate=cost,
    )(pred2, targ2, w1_bf16, b1, w2_bf16)
    return out[0, 0]


def _reference(pred_nchw, target_nchw, w1_bf16, b1, w2_bf16, b2):
    """Pure-JAX reference in the ORIGINAL formulation: per-branch features with
    b2 included, then MSE of the difference.  Uses the same bf16-weight /
    bf16-activation, f32-accumulate precision as the kernel, so the kernel's
    b2-cancellation + stacked-batch algebra is independently validated."""
    n = pred_nchw.shape[0]
    p = pred_nchw.reshape(n, -1).astype(jnp.float32)
    t = target_nchw.reshape(n, -1).astype(jnp.float32)
    mse = jnp.mean((p - t) ** 2, axis=-1)
    loss1 = LOSS_WEIGHT1 * PSNR_SCALE * jnp.mean(jnp.log(mse + EPS))

    def feats(x):
        h = jnp.dot(x.astype(jnp.bfloat16), w1_bf16,
                    preferred_element_type=jnp.float32) + b1
        h = jax.nn.gelu(h)
        return jnp.dot(h.astype(jnp.bfloat16), w2_bf16,
                       preferred_element_type=jnp.float32) + b2

    fx = feats(p)
    fy = jax.lax.stop_gradient(feats(t))
    loss2 = LOSS_WEIGHT2 * jnp.mean((fx - fy) ** 2)
    return loss1 + loss2


if __name__ == "__main__":
    key = jax.random.PRNGKey(0)
    k_pred, k_targ, k_w1, k_w2 = jax.random.split(key, 4)

    # Small RGB-image-like inputs: N=2, C=3, H=W=16  -> D = 768 (6 * 128 lanes)
    N, C, H, W = 2, 3, 16, 16
    D = C * H * W
    H1, F = 128, 128   # surrogate MLP hidden / feature widths

    pred = jax.random.uniform(k_pred, (N, C, H, W), dtype=jnp.float32)
    target = jax.random.uniform(k_targ, (N, C, H, W), dtype=jnp.float32)

    # Deterministic surrogate feature-extractor weights; stored in bf16 so the
    # kernel's dominant weight DMA is half the f32 size.
    w1 = (jax.random.normal(k_w1, (D, H1), dtype=jnp.float32)
          * (1.0 / np.sqrt(D))).astype(jnp.bfloat16)
    b1 = jnp.zeros((1, H1), dtype=jnp.float32)
    w2 = (jax.random.normal(k_w2, (H1, F), dtype=jnp.float32)
          * (1.0 / np.sqrt(H1))).astype(jnp.bfloat16)
    b2 = jnp.zeros((1, F), dtype=jnp.float32)   # reference only; cancels in fx - fy

    loss = jax.block_until_ready(mix_loss(pred, target, w1, b1, w2))
    ref = jax.block_until_ready(_reference(pred, target, w1, b1, w2, b2))

    np.testing.assert_allclose(np.asarray(loss), np.asarray(ref), rtol=1e-4, atol=1e-4)
    print("KERNEL_OK")
</pallas_src>

<mosaic_0001>
module attributes {stable_mosaic.version = 11 : i64} {
  func.func @_mix_loss_kernel(%arg0: memref<2x768xf32, #tpu.memory_space<vmem>>, %arg1: memref<2x768xf32, #tpu.memory_space<vmem>>, %arg2: memref<768x128xbf16, #tpu.memory_space<vmem>>, %arg3: memref<1x128xf32, #tpu.memory_space<vmem>>, %arg4: memref<128x128xbf16, #tpu.memory_space<vmem>>, %arg5: memref<1x1xf32, #tpu.memory_space<smem>>, %arg6: memref<4x768xf32, #tpu.memory_space<vmem>>) attributes {dimension_semantics = [], scalar_prefetch = 0 : i64, scratch_operands = 1 : i64, tpu.core_type = #tpu.core_type<tc>} {
    %c0 = arith.constant 0 : index
    %c0_0 = arith.constant 0 : index
    %0 = vector.load %arg0[%c0, %c0_0] : memref<2x768xf32, #tpu.memory_space<vmem>>, vector<2x768xf32>
    %c0_1 = arith.constant 0 : index
    %c0_2 = arith.constant 0 : index
    %1 = vector.load %arg1[%c0_1, %c0_2] : memref<2x768xf32, #tpu.memory_space<vmem>>, vector<2x768xf32>
    %2 = arith.subf %0, %1 : vector<2x768xf32>
    %3 = arith.mulf %2, %2 : vector<2x768xf32>
    %cst = arith.constant dense<0.000000e+00> : vector<2xf32>
    %4 = vector.multi_reduction <add>, %3, %cst [1] : vector<2x768xf32> to vector<2xf32>
    %5 = vector.shape_cast %4 : vector<2xf32> to vector<2x1xf32>
    %cst_3 = arith.constant 7.680000e+02 : f32
    %6 = vector.broadcast %cst_3 : f32 to vector<2x1xf32>
    %7 = arith.divf %5, %6 : vector<2x1xf32>
    %cst_4 = arith.constant 9.99999993E-9 : f32
    %8 = vector.broadcast %cst_4 : f32 to vector<2x1xf32>
    %9 = arith.addf %7, %8 : vector<2x1xf32>
    %10 = math.log %9 : vector<2x1xf32>
    %11 = vector.shape_cast %10 : vector<2x1xf32> to vector<1x2x1xf32>
    %cst_5 = arith.constant dense<0.000000e+00> : vector<1xf32>
    %12 = vector.multi_reduction <add>, %11, %cst_5 [1, 2] : vector<1x2x1xf32> to vector<1xf32>
    %13 = vector.shape_cast %12 : vector<1xf32> to vector<1x1x1xf32>
    %14 = vector.extract %13[0, 0, 0] : f32 from vector<1x1x1xf32>
    %cst_6 = arith.constant 2.000000e+00 : f32
    %15 = arith.divf %14, %cst_6 : f32
    %cst_7 = arith.constant 2.17147231 : f32
    %16 = arith.mulf %cst_7, %15 : f32
    %c0_8 = arith.constant 0 : index
    %c0_9 = arith.constant 0 : index
    %17 = vector.load %arg6[%c0_8, %c0_9] : memref<4x768xf32, #tpu.memory_space<vmem>>, vector<2x768xf32>
    tpu.vector_store %arg6[%c0_8, %c0_9], %0 {strides = array<i32>} : memref<4x768xf32, #tpu.memory_space<vmem>>, vector<2x768xf32>,
    %c2 = arith.constant 2 : index
    %c0_10 = arith.constant 0 : index
    %18 = vector.load %arg6[%c2, %c0_10] : memref<4x768xf32, #tpu.memory_space<vmem>>, vector<2x768xf32>
    tpu.vector_store %arg6[%c2, %c0_10], %1 {strides = array<i32>} : memref<4x768xf32, #tpu.memory_space<vmem>>, vector<2x768xf32>,
    %c0_11 = arith.constant 0 : index
    %c0_12 = arith.constant 0 : index
    %19 = vector.load %arg6[%c0_11, %c0_12] : memref<4x768xf32, #tpu.memory_space<vmem>>, vector<4x768xf32>
    %20 = arith.truncf %19 : vector<4x768xf32> to vector<4x768xbf16>
    %c0_13 = arith.constant 0 : index
    %c0_14 = arith.constant 0 : index
    %21 = vector.load %arg2[%c0_13, %c0_14] : memref<768x128xbf16, #tpu.memory_space<vmem>>, vector<768x128xbf16>
    %cst_15 = arith.constant dense<0.000000e+00> : vector<4x128xf32>
    %22 = tpu.matmul %20, %21, %cst_15 {dimension_numbers = #tpu.dot_dimension_numbers<[1], [0], [0], [1], [0, 0, 1, 1], [], []>} : vector<4x768xbf16>, vector<768x128xbf16>, vector<4x128xf32> -> vector<4x128xf32>
    %c0_16 = arith.constant 0 : index
    %c0_17 = arith.constant 0 : index
    %23 = vector.load %arg3[%c0_16, %c0_17] : memref<1x128xf32, #tpu.memory_space<vmem>>, vector<1x128xf32>
    %24 = vector.broadcast %23 : vector<1x128xf32> to vector<4x128xf32>
    %25 = arith.addf %22, %24 : vector<4x128xf32>
    %26 = arith.mulf %25, %25 : vector<4x128xf32>
    %27 = arith.mulf %25, %26 : vector<4x128xf32>
    %cst_18 = arith.constant 4.471500e-02 : f32
    %28 = vector.broadcast %cst_18 : f32 to vector<4x128xf32>
    %29 = arith.mulf %28, %27 : vector<4x128xf32>
    %30 = arith.addf %25, %29 : vector<4x128xf32>
    %cst_19 = arith.constant 0.797884583 : f32
    %31 = vector.broadcast %cst_19 : f32 to vector<4x128xf32>
    %32 = arith.mulf %31, %30 : vector<4x128xf32>
    %33 = math.tanh %32 : vector<4x128xf32>
    %cst_20 = arith.constant 1.000000e+00 : f32
    %34 = vector.broadcast %cst_20 : f32 to vector<4x128xf32>
    %35 = arith.addf %34, %33 : vector<4x128xf32>
    %cst_21 = arith.constant 5.000000e-01 : f32
    %36 = vector.broadcast %cst_21 : f32 to vector<4x128xf32>
    %37 = arith.mulf %36, %35 : vector<4x128xf32>
    %38 = arith.mulf %25, %37 : vector<4x128xf32>
    %39 = arith.truncf %38 : vector<4x128xf32> to vector<4x128xbf16>
    %c0_22 = arith.constant 0 : index
    %c0_23 = arith.constant 0 : index
    %40 = vector.load %arg4[%c0_22, %c0_23] : memref<128x128xbf16, #tpu.memory_space<vmem>>, vector<128x128xbf16>
    %cst_24 = arith.constant dense<0.000000e+00> : vector<4x128xf32>
    %41 = tpu.matmul %39, %40, %cst_24 {dimension_numbers = #tpu.dot_dimension_numbers<[1], [0], [0], [1], [0, 0, 1, 1], [], []>} : vector<4x128xbf16>, vector<128x128xbf16>, vector<4x128xf32> -> vector<4x128xf32>
    %42 = vector.extract_strided_slice %41 {offsets = [0, 0], sizes = [2, 128], strides = [1, 1]} : vector<4x128xf32> to vector<2x128xf32>
    %43 = vector.extract_strided_slice %41 {offsets = [2, 0], sizes = [2, 128], strides = [1, 1]} : vector<4x128xf32> to vector<2x128xf32>
    %44 = arith.subf %42, %43 : vector<2x128xf32>
    %45 = arith.mulf %44, %44 : vector<2x128xf32>
    %46 = vector.shape_cast %45 : vector<2x128xf32> to vector<1x2x128xf32>
    %cst_25 = arith.constant dense<0.000000e+00> : vector<1xf32>
    %47 = vector.multi_reduction <add>, %46, %cst_25 [1, 2] : vector<1x2x128xf32> to vector<1xf32>
    %48 = vector.shape_cast %47 : vector<1xf32> to vector<1x1x1xf32>
    %49 = vector.extract %48[0, 0, 0] : f32 from vector<1x1x1xf32>
    %cst_26 = arith.constant 2.560000e+02 : f32
    %50 = arith.divf %49, %cst_26 : f32
    %cst_27 = arith.constant 1.000000e+02 : f32
    %51 = arith.mulf %cst_27, %50 : f32
    %52 = arith.addf %16, %51 : f32
    %c0_28 = arith.constant 0 : index
    %c0_29 = arith.constant 0 : index
    %53 = memref.load %arg5[%c0_28, %c0_29] : memref<1x1xf32, #tpu.memory_space<smem>>
    memref.store %52, %arg5[%c0_28, %c0_29] : memref<1x1xf32, #tpu.memory_space<smem>>
    return
  }
}

</mosaic_0001>

<llo_original>
// kernel: tpu_custom_call.1
$region0: #{tpu_custom_call.1}
  #allocation0 [shape = 'u32[]', space=smem, size = 0x4, offset = 0x4, fixed_abs, tag = 'smem constant byte address 0x4 - core index']
  #allocation1 [shape = 'u32[144,128]{1,0:T(1,128)}', space=vmem, size = 0x12000, scoped, tag = 'internal scratch']
  #allocation2 [shape = 'f32[4,768]{1,0:T(4,128)}', space=vmem, size = 0x3000, scoped, tag = 'scratch operand']
  %s0 = inlined_call_operand.hbm [shape: f32[2,768], index: 0, kind: input, shape index: {}]
  %s1 = inlined_call_operand.hbm [shape: f32[2,768], index: 1, kind: input, shape index: {}]
  %s2 = inlined_call_operand.hbm [shape: bf16[768,128], index: 2, kind: input, shape index: {}]
  %s3 = inlined_call_operand.vmem [shape: f32[1,128], index: 3, kind: input, shape index: {}]
  %s4 = inlined_call_operand.hbm [shape: bf16[128,128], index: 4, kind: input, shape index: {}]
  %s5 = inlined_call_operand.hbm [shape: f32[1,1], index: 5, kind: output, shape index: {}]
  %s6 = sld [smem:[#allocation0]]
  $region46: #{tpu_custom_call.1} parent=0
    _
  %s8 = ssub.s32 1, %s6
  %s9 = scalar_select 0, %s8, %s6
  $region1: #{tpu_custom_call.1} parent=0
    #allocation3 [shape = 'u8[6144]{0}', space=vmem, size = 0x1800, scoped, tag = 'input window, operand 0, single buffered']
    #allocation4 [shape = 's32[1]{0}', space=sflag, size = 0x4, scoped, tag = 'scoped memory for tpu_custom_call.1']
    #allocation5 [shape = 's32[1]{0}', space=sflag, size = 0x4, scoped, tag = 'scoped memory for tpu_custom_call.1']
    #allocation6 [shape = 'u8[6144]{0}', space=vmem, size = 0x1800, scoped, tag = 'input window, operand 1, single buffered']
    #allocation7 [shape = 's32[1]{0}', space=sflag, size = 0x4, scoped, tag = 'scoped memory for tpu_custom_call.1']
    #allocation8 [shape = 'u8[196608]{0}', space=vmem, size = 0x30000, scoped, tag = 'input window, operand 2, single buffered']
    #allocation9 [shape = 'u8[32768]{0}', space=vmem, size = 0x8000, scoped, tag = 'input window, operand 4, single buffered']
    #allocation10 [shape = 's32[1]{0}', space=sflag, size = 0x4, scoped, tag = 'scoped memory for tpu_custom_call.1']
    #allocation11 [shape = 'u8[512]{0}', space=smem, size = 0x200, scoped, tag = 'output window, operand 0, single buffered']
    %10 = vsyncpa [#allocation4], 0
    %11 = vsyncpa [#allocation7], 0
    %12 = vsyncpa [#allocation10], 0
    %13 = vsyncpa [#allocation5], 0
    // Predicated region
    $region2: #{tpu_custom_call.1} parent=1 // pred_check
      _
    $region3: #{tpu_custom_call.1} parent=1 // pred_check_branch
      %15 = sbr.rel (0) target = $region5
    $region4: #{tpu_custom_call.1} parent=1 // pred_region
      %s17 = ssub.s32 192, 192
      %18 = vsyncadd [#allocation4], %s17
      %s20 = sshll.u32 [#allocation3], 4
      %s21 = int_to_ptr.vmem [resolvable:$true] %s20
      %23 = dma.hbm_to_vmem [thread:$0]  %s0, 192, %s21, [#allocation4]
    $region5: #{tpu_custom_call.1} parent=1 // pred_fallthru
      _
    // Predicated region
    $region6: #{tpu_custom_call.1} parent=1 // pred_check
      _
    $region7: #{tpu_custom_call.1} parent=1 // pred_check_branch
      %25 = sbr.rel (0) target = $region9
    $region8: #{tpu_custom_call.1} parent=1 // pred_region
      %s27 = ssub.s32 192, 192
      %28 = vsyncadd [#allocation7], %s27
      %s30 = sshll.u32 [#allocation6], 4
      %s31 = int_to_ptr.vmem [resolvable:$true] %s30
      %33 = dma.hbm_to_vmem [thread:$0]  %s1, 192, %s31, [#allocation7]
    $region9: #{tpu_custom_call.1} parent=1 // pred_fallthru
      _
    // Predicated region
    $region10: #{tpu_custom_call.1} parent=1 // pred_check
      _
    $region11: #{tpu_custom_call.1} parent=1 // pred_check_branch
      %35 = sbr.rel (0) target = $region13
    $region12: #{tpu_custom_call.1} parent=1 // pred_region
      %s37 = ssub.s32 6144, 6144
      %38 = vsyncadd [#allocation7], %s37
      %s39 = sshll.u32 [#allocation8], 4
      %s40 = int_to_ptr.vmem [resolvable:$true] %s39
      %45 = dma.hbm_to_vmem [thread:$0]  %s2, 6144, %s40, [#allocation7], 64, 64, 4
    $region13: #{tpu_custom_call.1} parent=1 // pred_fallthru
      _
    // Predicated region
    $region14: #{tpu_custom_call.1} parent=1 // pred_check
      _
    $region15: #{tpu_custom_call.1} parent=1 // pred_check_branch
      %47 = sbr.rel (0) target = $region17
    $region16: #{tpu_custom_call.1} parent=1 // pred_region
      _
    $region17: #{tpu_custom_call.1} parent=1 // pred_fallthru
      _
    // Predicated region
    $region18: #{tpu_custom_call.1} parent=1 // pred_check
      _
    $region19: #{tpu_custom_call.1} parent=1 // pred_check_branch
      %49 = sbr.rel (0) target = $region21
    $region20: #{tpu_custom_call.1} parent=1 // pred_region
      %s51 = ssub.s32 1024, 1024
      %52 = vsyncadd [#allocation10], %s51
      %s53 = sshll.u32 [#allocation9], 4
      %s54 = int_to_ptr.vmem [resolvable:$true] %s53
      %59 = dma.hbm_to_vmem [thread:$0]  %s4, 1024, %s54, [#allocation10], 64, 64, 4
    $region21: #{tpu_custom_call.1} parent=1 // pred_fallthru
      _
    // Predicated region
    $region22: #{tpu_custom_call.1} parent=1 // pred_check
      _
    $region23: #{tpu_custom_call.1} parent=1 // pred_check_branch
      %61 = sbr.rel (0) target = $region25
    $region24: #{tpu_custom_call.1} parent=1 // pred_region
      %62 = dma.done [#allocation4], 192
    $region25: #{tpu_custom_call.1} parent=1 // pred_fallthru
      _
    // Predicated region
    $region26: #{tpu_custom_call.1} parent=1 // pred_check
      _
    $region27: #{tpu_custom_call.1} parent=1 // pred_check_branch
      %64 = sbr.rel (0) target = $region29
    $region28: #{tpu_custom_call.1} parent=1 // pred_region
      %65 = dma.done [#allocation7], 192
    $region29: #{tpu_custom_call.1} parent=1 // pred_fallthru
      _
    // Predicated region
    $region30: #{tpu_custom_call.1} parent=1 // pred_check
      _
    $region31: #{tpu_custom_call.1} parent=1 // pred_check_branch
      %67 = sbr.rel (0) target = $region33
    $region32: #{tpu_custom_call.1} parent=1 // pred_region
      %68 = dma.done [#allocation7], 6144
    $region33: #{tpu_custom_call.1} parent=1 // pred_fallthru
      _
    // Predicated region
    $region34: #{tpu_custom_call.1} parent=1 // pred_check
      _
    $region35: #{tpu_custom_call.1} parent=1 // pred_check_branch
      %70 = sbr.rel (0) target = $region37
    $region36: #{tpu_custom_call.1} parent=1 // pred_region
      %71 = dma.done [#allocation10], 1024
    $region37: #{tpu_custom_call.1} parent=1 // pred_fallthru
      _
    %v73 = vld [vmem:[#allocation3] sm:$0xff]
    %v74 = vld [vmem:[#allocation3 + $0x8] sm:$0xf]
    %v75 = vld [vmem:[#allocation6] sm:$0xff]
    %v76 = vld [vmem:[#allocation6 + $0x8] sm:$0xf]
    %v77 = vsub.f32 %v73, %v75
    %v78 = vsub.f32 %v74, %v76
    %v79 = vmul.f32 %v77, %v77
    %v80 = vmul.f32 %v78, %v78
    %v83 = vcombine.high %v79, %v79
    %v85 = vunpack.c.l.s4 1983009808
    %v86 = vunpack.c.0.s8 %v85
    %v87 = vlaneseq
    %v88 = vshrl.u32 %v87, 7
    %v89 = vsub.s32 %v86, %v88
    %v90 = vrot.slane %v79, %v89
    %v92 = vunpack.c.l.s4 1983009808
    %v93 = vunpack.c.0.s8 %v92
    %v94 = vlaneseq
    %v95 = vshrl.u32 %v94, 7
    %v96 = vsub.s32 %v93, %v95
    %v97 = vrot.slane %v83, %v96
    %v98 = vcombine.high %v90, %v90
    %v99 = vcombine.high %v97, %v97
    %v101 = vunpack.c.l.s4 1983009808
    %v102 = vunpack.c.0.s8 %v101
    %v103 = vlaneseq
    %v104 = vshrl.u32 %v103, 7
    %v105 = vsub.s32 %v102, %v104
    %v106 = vrot.slane %v80, %v105
    %v107 = vcombine.high %v106, %v106
    %vm114 = vcmask 1041408
    %v115 = vsel %vm114, %v90, 0.0
    %v116 = vsel %vm114, %v98, 0.0
    %v117 = vadd.f32 %v115, %v116
    %v118 = vsel %vm114, %v97, 0.0
    %v119 = vadd.f32 %v117, %v118
    %v120 = vsel %vm114, %v99, 0.0
    %v121 = vadd.f32 %v119, %v120
    %v122 = vsel %vm114, %v106, 0.0
    %v123 = vadd.f32 %v121, %v122
    %v124 = vsel %vm114, %v107, 0.0
    %v125 = vadd.f32 %v123, %v124
    %126 = vadd.xlane.f32.xlu0 %v125
    %v127 = vpop.xlane.xlu0 %126
    %v128 = vrcp.pop 768.0
    %v129 = vmul.f32 %v127, %v128
    %v130 = vadd.f32 %v129, 1e-08
    %v131 = vlog2.pop %v130
    %v132 = vmul.f32 %v131, 0.6931472
    %vm133 = vcmask 1024
    %v134 = vsel %vm133, %v132, 0.0
    %135 = vadd.xlane.f32.xlu0 %v134
    %v136 = vpop.xlane.xlu0 %135
    %v137 = vrot.slane %v136, 4
    %v138 = vadd.f32 %v136, %v137
    %v139 = vrot.slane %v138, 2
    %v140 = vadd.f32 %v138, %v139
    %v141 = vrot.slane %v140, 1
    %v142 = vadd.f32 %v140, %v141
    %s143 = vtos %v142
    %v144 = vrcp.pop 2.0
    %s145 = vtos %v144
    %s146 = smul.f32 %s143, %s145
    %s147 = smul.f32 %s146, 2.1714723
    %v150 = vcombine.high %v73, %v73
    %v152 = vunpack.c.l.s4 1983009808
    %v153 = vunpack.c.0.s8 %v152
    %v154 = vlaneseq
    %v155 = vshrl.u32 %v154, 7
    %v156 = vsub.s32 %v153, %v155
    %v157 = vrot.slane %v73, %v156
    %v159 = vunpack.c.l.s4 1983009808
    %v160 = vunpack.c.0.s8 %v159
    %v161 = vlaneseq
    %v162 = vshrl.u32 %v161, 7
    %v163 = vsub.s32 %v160, %v162
    %v164 = vrot.slane %v150, %v163
    %v166 = vunpack.c.l.s4 1983009808
    %v167 = vunpack.c.0.s8 %v166
    %v168 = vlaneseq
    %v169 = vshrl.u32 %v168, 7
    %v170 = vsub.s32 %v167, %v169
    %v171 = vrot.slane %v74, %v170
    %175 = vst [vmem:[#allocation2] sm:$0x33] %v157
    %176 = vst [vmem:[#allocation2 + $0x8] sm:$0x33] %v164
    %177 = vst [vmem:[#allocation2 + $0x10] sm:$0x33] %v171
    %v180 = vcombine.low %v75, %v75
    %v182 = vunpack.c.l.s4 1983009808
    %v183 = vunpack.c.0.s8 %v182
    %v184 = vlaneseq
    %v185 = vshrl.u32 %v184, 7
    %v186 = vsub.s32 %v183, %v185
    %v187 = vrot.slane %v180, %v186
    %v189 = vunpack.c.l.s4 1983009808
    %v190 = vunpack.c.0.s8 %v189
    %v191 = vlaneseq
    %v192 = vshrl.u32 %v191, 7
    %v193 = vsub.s32 %v190, %v192
    %v194 = vrot.slane %v75, %v193
    %v195 = vcombine.low %v76, %v76
    %v197 = vunpack.c.l.s4 1983009808
    %v198 = vunpack.c.0.s8 %v197
    %v199 = vlaneseq
    %v200 = vshrl.u32 %v199, 7
    %v201 = vsub.s32 %v198, %v200
    %v202 = vrot.slane %v195, %v201
    %206 = vst [vmem:[#allocation2] sm:$0xcc] %v187
    %207 = vst [vmem:[#allocation2 + $0x8] sm:$0xcc] %v194
    %208 = vst [vmem:[#allocation2 + $0x10] sm:$0xcc] %v202
    %v209 = vld [vmem:[#allocation2] sm:$0xff]
    %v210 = vld [vmem:[#allocation2 + $0x8] sm:$0xff]
    %v211 = vld [vmem:[#allocation2 + $0x10] sm:$0xff]
    %v215 = vcombine.high %v209, %v209
    %v216 = vcombine.high %v210, %v210
    %v217 = vcombine.high %v211, %v211
    %v221 = vpack.c.bf16 %v209, %v209
    %v222 = vpack.c.bf16 %v215, %v215
    %v223 = vpack.c.bf16 %v210, %v210
    %v224 = vpack.c.bf16 %v216, %v216
    %v225 = vpack.c.bf16 %v211, %v211
    %v226 = vpack.c.bf16 %v217, %v217
    %v227 = vld [vmem:[#allocation8] sm:$0xf]
    %v228 = vld [vmem:[#allocation8 + $0x4] sm:$0xf]
    %v229 = vld [vmem:[#allocation8 + $0x8] sm:$0xf]
    %v230 = vld [vmem:[#allocation8 + $0xc] sm:$0xf]
    %v231 = vld [vmem:[#allocation8 + $0x10] sm:$0xf]
    %v232 = vld [vmem:[#allocation8 + $0x14] sm:$0xf]
    %v233 = vld [vmem:[#allocation8 + $0x18] sm:$0xf]
    %v234 = vld [vmem:[#allocation8 + $0x1c] sm:$0xf]
    %v235 = vld [vmem:[#allocation8 + $0x20] sm:$0xf]
    %v236 = vld [vmem:[#allocation8 + $0x24] sm:$0xf]
    %v237 = vld [vmem:[#allocation8 + $0x28] sm:$0xf]
    %v238 = vld [vmem:[#allocation8 + $0x2c] sm:$0xf]
    %v239 = vld [vmem:[#allocation8 + $0x30] sm:$0xf]
    %v240 = vld [vmem:[#allocation8 + $0x34] sm:$0xf]
    %v241 = vld [vmem:[#allocation8 + $0x38] sm:$0xf]
    %v242 = vld [vmem:[#allocation8 + $0x3c] sm:$0xf]
    %v243 = vld [vmem:[#allocation8 + $0x40] sm:$0xf]
    %v244 = vld [vmem:[#allocation8 + $0x44] sm:$0xf]
    %v245 = vld [vmem:[#allocation8 + $0x48] sm:$0xf]
    %v246 = vld [vmem:[#allocation8 + $0x4c] sm:$0xf]
    %v247 = vld [vmem:[#allocation8 + $0x50] sm:$0xf]
    %v248 = vld [vmem:[#allocation8 + $0x54] sm:$0xf]
    %v249 = vld [vmem:[#allocation8 + $0x58] sm:$0xf]
    %v250 = vld [vmem:[#allocation8 + $0x5c] sm:$0xf]
    %v251 = vld [vmem:[#allocation8 + $0x60] sm:$0xf]
    %v252 = vld [vmem:[#allocation8 + $0x64] sm:$0xf]
    %v253 = vld [vmem:[#allocation8 + $0x68] sm:$0xf]
    %v254 = vld [vmem:[#allocation8 + $0x6c] sm:$0xf]
    %v255 = vld [vmem:[#allocation8 + $0x70] sm:$0xf]
    %v256 = vld [vmem:[#allocation8 + $0x74] sm:$0xf]
    %v257 = vld [vmem:[#allocation8 + $0x78] sm:$0xf]
    %v258 = vld [vmem:[#allocation8 + $0x7c] sm:$0xf]
    %v259 = vld [vmem:[#allocation8 + $0x80] sm:$0xf]
    %v260 = vld [vmem:[#allocation8 + $0x84] sm:$0xf]
    %v261 = vld [vmem:[#allocation8 + $0x88] sm:$0xf]
    %v262 = vld [vmem:[#allocation8 + $0x8c] sm:$0xf]
    %v263 = vld [vmem:[#allocation8 + $0x90] sm:$0xf]
    %v264 = vld [vmem:[#allocation8 + $0x94] sm:$0xf]
    %v265 = vld [vmem:[#allocation8 + $0x98] sm:$0xf]
    %v266 = vld [vmem:[#allocation8 + $0x9c] sm:$0xf]
    %v267 = vld [vmem:[#allocation8 + $0xa0] sm:$0xf]
    %v268 = vld [vmem:[#allocation8 + $0xa4] sm:$0xf]
    %v269 = vld [vmem:[#allocation8 + $0xa8] sm:$0xf]
    %v270 = vld [vmem:[#allocation8 + $0xac] sm:$0xf]
    %v271 = vld [vmem:[#allocation8 + $0xb0] sm:$0xf]
    %v272 = vld [vmem:[#allocation8 + $0xb4] sm:$0xf]
    %v273 = vld [vmem:[#allocation8 + $0xb8] sm:$0xf]
    %v274 = vld [vmem:[#allocation8 + $0xbc] sm:$0xf]
    %v275 = vld [vmem:[#allocation8 + $0xc0] sm:$0xf]
    %v276 = vld [vmem:[#allocation8 + $0xc4] sm:$0xf]
    %v277 = vld [vmem:[#allocation8 + $0xc8] sm:$0xf]
    %v278 = vld [vmem:[#allocation8 + $0xcc] sm:$0xf]
    %v279 = vld [vmem:[#allocation8 + $0xd0] sm:$0xf]
    %v280 = vld [vmem:[#allocation8 + $0xd4] sm:$0xf]
    %v281 = vld [vmem:[#allocation8 + $0xd8] sm:$0xf]
    %v282 = vld [vmem:[#allocation8 + $0xdc] sm:$0xf]
    %v283 = vld [vmem:[#allocation8 + $0xe0] sm:$0xf]
    %v284 = vld [vmem:[#allocation8 + $0xe4] sm:$0xf]
    %v285 = vld [vmem:[#allocation8 + $0xe8] sm:$0xf]
    %v286 = vld [vmem:[#allocation8 + $0xec] sm:$0xf]
    %v287 = vld [vmem:[#allocation8 + $0xf0] sm:$0xf]
    %v288 = vld [vmem:[#allocation8 + $0xf4] sm:$0xf]
    %v289 = vld [vmem:[#allocation8 + $0xf8] sm:$0xf]
    %v290 = vld [vmem:[#allocation8 + $0xfc] sm:$0xf]
    %v291 = vld [vmem:[#allocation8 + $0x100] sm:$0xf]
    %v292 = vld [vmem:[#allocation8 + $0x104] sm:$0xf]
    %v293 = vld [vmem:[#allocation8 + $0x108] sm:$0xf]
    %v294 = vld [vmem:[#allocation8 + $0x10c] sm:$0xf]
    %v295 = vld [vmem:[#allocation8 + $0x110] sm:$0xf]
    %v296 = vld [vmem:[#allocation8 + $0x114] sm:$0xf]
    %v297 = vld [vmem:[#allocation8 + $0x118] sm:$0xf]
    %v298 = vld [vmem:[#allocation8 + $0x11c] sm:$0xf]
    %v299 = vld [vmem:[#allocation8 + $0x120] sm:$0xf]
    %v300 = vld [vmem:[#allocation8 + $0x124] sm:$0xf]
    %v301 = vld [vmem:[#allocation8 + $0x128] sm:$0xf]
    %v302 = vld [vmem:[#allocation8 + $0x12c] sm:$0xf]
    %v303 = vld [vmem:[#allocation8 + $0x130] sm:$0xf]
    %v304 = vld [vmem:[#allocation8 + $0x134] sm:$0xf]
    %v305 = vld [vmem:[#allocation8 + $0x138] sm:$0xf]
    %v306 = vld [vmem:[#allocation8 + $0x13c] sm:$0xf]
    %v307 = vld [vmem:[#allocation8 + $0x140] sm:$0xf]
    %v308 = vld [vmem:[#allocation8 + $0x144] sm:$0xf]
    %v309 = vld [vmem:[#allocation8 + $0x148] sm:$0xf]
    %v310 = vld [vmem:[#allocation8 + $0x14c] sm:$0xf]
    %v311 = vld [vmem:[#allocation8 + $0x150] sm:$0xf]
    %v312 = vld [vmem:[#allocation8 + $0x154] sm:$0xf]
    %v313 = vld [vmem:[#allocation8 + $0x158] sm:$0xf]
    %v314 = vld [vmem:[#allocation8 + $0x15c] sm:$0xf]
    %v315 = vld [vmem:[#allocation8 + $0x160] sm:$0xf]
    %v316 = vld [vmem:[#allocation8 + $0x164] sm:$0xf]
    %v317 = vld [vmem:[#allocation8 + $0x168] sm:$0xf]
    %v318 = vld [vmem:[#allocation8 + $0x16c] sm:$0xf]
    %v319 = vld [vmem:[#allocation8 + $0x170] sm:$0xf]
    %v320 = vld [vmem:[#allocation8 + $0x174] sm:$0xf]
    %v321 = vld [vmem:[#allocation8 + $0x178] sm:$0xf]
    %v322 = vld [vmem:[#allocation8 + $0x17c] sm:$0xf]
    %v323 = vld [vmem:[%s3] sm:$0x1]
    %v325 = vlaneseq
    %v326 = vshrl.u32 %v325, 7
    %v327 = vsub.s32 0, %v326
    %v328 = vrot.slane %v323, %v327
    %v426 = vunpack.c.l.b16 %v227
    %v427 = vunpack.c.l.b16 %v228
    %v428 = vunpack.c.l.b16 %v229
    %v429 = vunpack.c.l.b16 %v230
    %v430 = vunpack.c.l.b16 %v231
    %v431 = vunpack.c.l.b16 %v232
    %v432 = vunpack.c.l.b16 %v233
    %v433 = vunpack.c.l.b16 %v234
    %v434 = vunpack.c.l.b16 %v235
    %v435 = vunpack.c.l.b16 %v236
    %v436 = vunpack.c.l.b16 %v237
    %v437 = vunpack.c.l.b16 %v238
    %v438 = vunpack.c.l.b16 %v239
    %v439 = vunpack.c.l.b16 %v240
    %v440 = vunpack.c.l.b16 %v241
    %v441 = vunpack.c.l.b16 %v242
    %v442 = vunpack.c.l.b16 %v243
    %v443 = vunpack.c.l.b16 %v244
    %v444 = vunpack.c.l.b16 %v245
    %v445 = vunpack.c.l.b16 %v246
    %v446 = vunpack.c.l.b16 %v247
    %v447 = vunpack.c.l.b16 %v248
    %v448 = vunpack.c.l.b16 %v249
    %v449 = vunpack.c.l.b16 %v250
    %v450 = vunpack.c.l.b16 %v251
    %v451 = vunpack.c.l.b16 %v252
    %v452 = vunpack.c.l.b16 %v253
    %v453 = vunpack.c.l.b16 %v254
    %v454 = vunpack.c.l.b16 %v255
    %v455 = vunpack.c.l.b16 %v256
    %v456 = vunpack.c.l.b16 %v257
    %v457 = vunpack.c.l.b16 %v258
    %v458 = vunpack.c.l.b16 %v259
    %v459 = vunpack.c.l.b16 %v260
    %v460 = vunpack.c.l.b16 %v261
    %v461 = vunpack.c.l.b16 %v262
    %v462 = vunpack.c.l.b16 %v263
    %v463 = vunpack.c.l.b16 %v264
    %v464 = vunpack.c.l.b16 %v265
    %v465 = vunpack.c.l.b16 %v266
    %v466 = vunpack.c.l.b16 %v267
    %v467 = vunpack.c.l.b16 %v268
    %v468 = vunpack.c.l.b16 %v269
    %v469 = vunpack.c.l.b16 %v270
    %v470 = vunpack.c.l.b16 %v271
    %v471 = vunpack.c.l.b16 %v272
    %v472 = vunpack.c.l.b16 %v273
    %v473 = vunpack.c.l.b16 %v274
    %v474 = vunpack.c.l.b16 %v275
    %v475 = vunpack.c.l.b16 %v276
    %v476 = vunpack.c.l.b16 %v277
    %v477 = vunpack.c.l.b16 %v278
    %v478 = vunpack.c.l.b16 %v279
    %v479 = vunpack.c.l.b16 %v280
    %v480 = vunpack.c.l.b16 %v281
    %v481 = vunpack.c.l.b16 %v282
    %v482 = vunpack.c.l.b16 %v283
    %v483 = vunpack.c.l.b16 %v284
    %v484 = vunpack.c.l.b16 %v285
    %v485 = vunpack.c.l.b16 %v286
    %v486 = vunpack.c.l.b16 %v287
    %v487 = vunpack.c.l.b16 %v288
    %v488 = vunpack.c.l.b16 %v289
    %v489 = vunpack.c.l.b16 %v290
    %v490 = vunpack.c.l.b16 %v291
    %v491 = vunpack.c.l.b16 %v292
    %v492 = vunpack.c.l.b16 %v293
    %v493 = vunpack.c.l.b16 %v294
    %v494 = vunpack.c.l.b16 %v295
    %v495 = vunpack.c.l.b16 %v296
    %v496 = vunpack.c.l.b16 %v297
    %v497 = vunpack.c.l.b16 %v298
    %v498 = vunpack.c.l.b16 %v299
    %v499 = vunpack.c.l.b16 %v300
    %v500 = vunpack.c.l.b16 %v301
    %v501 = vunpack.c.l.b16 %v302
    %v502 = vunpack.c.l.b16 %v303
    %v503 = vunpack.c.l.b16 %v304
    %v504 = vunpack.c.l.b16 %v305
    %v505 = vunpack.c.l.b16 %v306
    %v506 = vunpack.c.l.b16 %v307
    %v507 = vunpack.c.l.b16 %v308
    %v508 = vunpack.c.l.b16 %v309
    %v509 = vunpack.c.l.b16 %v310
    %v510 = vunpack.c.l.b16 %v311
    %v511 = vunpack.c.l.b16 %v312
    %v512 = vunpack.c.l.b16 %v313
    %v513 = vunpack.c.l.b16 %v314
    %v514 = vunpack.c.l.b16 %v315
    %v515 = vunpack.c.l.b16 %v316
    %v516 = vunpack.c.l.b16 %v317
    %v517 = vunpack.c.l.b16 %v318
    %v518 = vunpack.c.l.b16 %v319
    %v519 = vunpack.c.l.b16 %v320
    %v520 = vunpack.c.l.b16 %v321
    %v521 = vunpack.c.l.b16 %v322
    %v522 = vpack.c.b16 %v427, %v426
    %v523 = vpack.c.b16 %v429, %v428
    %v524 = vpack.c.b16 %v431, %v430
    %v525 = vpack.c.b16 %v433, %v432
    %v526 = vpack.c.b16 %v435, %v434
    %v527 = vpack.c.b16 %v437, %v436
    %v528 = vpack.c.b16 %v439, %v438
    %v529 = vpack.c.b16 %v441, %v440
    %v530 = vpack.c.b16 %v443, %v442
    %v531 = vpack.c.b16 %v445, %v444
    %v532 = vpack.c.b16 %v447, %v446
    %v533 = vpack.c.b16 %v449, %v448
    %v534 = vpack.c.b16 %v451, %v450
    %v535 = vpack.c.b16 %v453, %v452
    %v536 = vpack.c.b16 %v455, %v454
    %v537 = vpack.c.b16 %v457, %v456
    %v538 = vpack.c.b16 %v459, %v458
    %v539 = vpack.c.b16 %v461, %v460
    %v540 = vpack.c.b16 %v463, %v462
    %v541 = vpack.c.b16 %v465, %v464
    %v542 = vpack.c.b16 %v467, %v466
    %v543 = vpack.c.b16 %v469, %v468
    %v544 = vpack.c.b16 %v471, %v470
    %v545 = vpack.c.b16 %v473, %v472
    %v546 = vpack.c.b16 %v475, %v474
    %v547 = vpack.c.b16 %v477, %v476
    %v548 = vpack.c.b16 %v479, %v478
    %v549 = vpack.c.b16 %v481, %v480
    %v550 = vpack.c.b16 %v483, %v482
    %v551 = vpack.c.b16 %v485, %v484
    %v552 = vpack.c.b16 %v487, %v486
    %v553 = vpack.c.b16 %v489, %v488
    %v554 = vpack.c.b16 %v491, %v490
    %v555 = vpack.c.b16 %v493, %v492
    %v556 = vpack.c.b16 %v495, %v494
    %v557 = vpack.c.b16 %v497, %v496
    %v558 = vpack.c.b16 %v499, %v498
    %v559 = vpack.c.b16 %v501, %v500
    %v560 = vpack.c.b16 %v503, %v502
    %v561 = vpack.c.b16 %v505, %v504
    %v562 = vpack.c.b16 %v507, %v506
    %v563 = vpack.c.b16 %v509, %v508
    %v564 = vpack.c.b16 %v511, %v510
    %v565 = vpack.c.b16 %v513, %v512
    %v566 = vpack.c.b16 %v515, %v514
    %v567 = vpack.c.b16 %v517, %v516
    %v568 = vpack.c.b16 %v519, %v518
    %v569 = vpack.c.b16 %v521, %v520
    %618 = vmatprep.subr.bf16.mxu0 0
    %619 = vmatpush1.bf16.msra.mxu0 %v522
    %620 = vmatprep.subr.bf16.mxu0 0
    %621 = vmatpush1.bf16.msra.mxu0 %v523
    %622 = vmatprep.subr.bf16.mxu0 0
    %623 = vmatpush1.bf16.msra.mxu0 %v524
    %624 = vmatprep.subr.bf16.mxu0 0
    %625 = vmatpush1.bf16.msra.mxu0 %v525
    %626 = vmatprep.subr.bf16.mxu0 0
    %627 = vmatpush1.bf16.msra.mxu0 %v526
    %628 = vmatprep.subr.bf16.mxu0 0
    %629 = vmatpush1.bf16.msra.mxu0 %v527
    %630 = vmatprep.subr.bf16.mxu0 0
    %631 = vmatpush1.bf16.msra.mxu0 %v528
    %632 = vmatprep.subr.bf16.mxu0 0
    %633 = vmatpush1.bf16.msra.mxu0 %v529
    %634 = vmatprep.subr.bf16.mxu0 0
    %635 = vmatpush1.bf16.msra.mxu0 %v530
    %636 = vmatprep.subr.bf16.mxu0 0
    %637 = vmatpush1.bf16.msra.mxu0 %v531
    %638 = vmatprep.subr.bf16.mxu0 0
    %639 = vmatpush1.bf16.msra.mxu0 %v532
    %640 = vmatprep.subr.bf16.mxu0 0
    %641 = vmatpush1.bf16.msra.mxu0 %v533
    %642 = vmatprep.subr.bf16.mxu0 0
    %643 = vmatpush1.bf16.msra.mxu0 %v534
    %644 = vmatprep.subr.bf16.mxu0 0
    %645 = vmatpush1.bf16.msra.mxu0 %v535
    %646 = vmatprep.subr.bf16.mxu0 0
    %647 = vmatpush1.bf16.msra.mxu0 %v536
    %648 = vmatprep.subr.bf16.mxu0 0
    %649 = vmatpush1.bf16.msra.mxu0 %v537
    %650 = vmatprep.mubr.bf16.mxu0 %v222
    %651 = vmatmul.mubr.bf16.gmra.mrb[0].mxu0 %v221
    %v652 = vpop.f32.mrb[0].mxu0
    %v653 = vadd.f32 %v328, %v652
    %v654 = vpop.f32.mrb[0].mxu0
    %v655 = vpop.f32.mrb[0].mxu0
    %v656 = vpop.f32.mrb[0].mxu0
    %657 = vdwg.mxu0
    %658 = vmatprep.subr.bf16.mxu0 0
    %659 = vmatpush1.bf16.msra.mxu0 %v538
    %660 = vmatprep.subr.bf16.mxu0 0
    %661 = vmatpush1.bf16.msra.mxu0 %v539
    %662 = vmatprep.subr.bf16.mxu0 0
    %663 = vmatpush1.bf16.msra.mxu0 %v540
    %664 = vmatprep.subr.bf16.mxu0 0
    %665 = vmatpush1.bf16.msra.mxu0 %v541
    %666 = vmatprep.subr.bf16.mxu0 0
    %667 = vmatpush1.bf16.msra.mxu0 %v542
    %668 = vmatprep.subr.bf16.mxu0 0
    %669 = vmatpush1.bf16.msra.mxu0 %v543
    %670 = vmatprep.subr.bf16.mxu0 0
    %671 = vmatpush1.bf16.msra.mxu0 %v544
    %672 = vmatprep.subr.bf16.mxu0 0
    %673 = vmatpush1.bf16.msra.mxu0 %v545
    %674 = vmatprep.subr.bf16.mxu0 0
    %675 = vmatpush1.bf16.msra.mxu0 %v546
    %676 = vmatprep.subr.bf16.mxu0 0
    %677 = vmatpush1.bf16.msra.mxu0 %v547
    %678 = vmatprep.subr.bf16.mxu0 0
    %679 = vmatpush1.bf16.msra.mxu0 %v548
    %680 = vmatprep.subr.bf16.mxu0 0
    %681 = vmatpush1.bf16.msra.mxu0 %v549
    %682 = vmatprep.subr.bf16.mxu0 0
    %683 = vmatpush1.bf16.msra.mxu0 %v550
    %684 = vmatprep.subr.bf16.mxu0 0
    %685 = vmatpush1.bf16.msra.mxu0 %v551
    %686 = vmatprep.subr.bf16.mxu0 0
    %687 = vmatpush1.bf16.msra.mxu0 %v552
    %688 = vmatprep.subr.bf16.mxu0 0
    %689 = vmatpush1.bf16.msra.mxu0 %v553
    %690 = vmatprep.mubr.bf16.mxu0 %v224
    %691 = vmatmul.mubr.bf16.gmra.mrb[0].mxu0 %v223
    %v692 = vpop.f32.mrb[0].mxu0
    %v693 = vadd.f32 %v653, %v692
    %v694 = vpop.f32.mrb[0].mxu0
    %v695 = vpop.f32.mrb[0].mxu0
    %v696 = vpop.f32.mrb[0].mxu0
    %697 = vdwg.mxu0
    %698 = vmatprep.subr.bf16.mxu0 0
    %699 = vmatpush1.bf16.msra.mxu0 %v554
    %700 = vmatprep.subr.bf16.mxu0 0
    %701 = vmatpush1.bf16.msra.mxu0 %v555
    %702 = vmatprep.subr.bf16.mxu0 0
    %703 = vmatpush1.bf16.msra.mxu0 %v556
    %704 = vmatprep.subr.bf16.mxu0 0
    %705 = vmatpush1.bf16.msra.mxu0 %v557
    %706 = vmatprep.subr.bf16.mxu0 0
    %707 = vmatpush1.bf16.msra.mxu0 %v558
    %708 = vmatprep.subr.bf16.mxu0 0
    %709 = vmatpush1.bf16.msra.mxu0 %v559
    %710 = vmatprep.subr.bf16.mxu0 0
    %711 = vmatpush1.bf16.msra.mxu0 %v560
    %712 = vmatprep.subr.bf16.mxu0 0
    %713 = vmatpush1.bf16.msra.mxu0 %v561
    %714 = vmatprep.subr.bf16.mxu0 0
    %715 = vmatpush1.bf16.msra.mxu0 %v562
    %716 = vmatprep.subr.bf16.mxu0 0
    %717 = vmatpush1.bf16.msra.mxu0 %v563
    %718 = vmatprep.subr.bf16.mxu0 0
    %719 = vmatpush1.bf16.msra.mxu0 %v564
    %720 = vmatprep.subr.bf16.mxu0 0
    %721 = vmatpush1.bf16.msra.mxu0 %v565
    %722 = vmatprep.subr.bf16.mxu0 0
    %723 = vmatpush1.bf16.msra.mxu0 %v566
    %724 = vmatprep.subr.bf16.mxu0 0
    %725 = vmatpush1.bf16.msra.mxu0 %v567
    %726 = vmatprep.subr.bf16.mxu0 0
    %727 = vmatpush1.bf16.msra.mxu0 %v568
    %728 = vmatprep.subr.bf16.mxu0 0
    %729 = vmatpush1.bf16.msra.mxu0 %v569
    %730 = vmatprep.mubr.bf16.mxu0 %v226
    %731 = vmatmul.mubr.bf16.gmra.mrb[0].mxu0 %v225
    %v732 = vpop.f32.mrb[0].mxu0
    %v733 = vadd.f32 %v693, %v732
    %v734 = vpop.f32.mrb[0].mxu0
    %v735 = vpop.f32.mrb[0].mxu0
    %v736 = vpop.f32.mrb[0].mxu0
    %737 = vdwg.mxu0
    %v738 = vmul.f32 %v733, %v733
    %v739 = vmul.f32 %v733, %v738
    %v740 = vmul.f32 %v739, 0.044715
    %v741 = vadd.f32 %v733, %v740
    %v742 = vmul.f32 %v741, 0.7978846
    %v743 = vtanh.pop %v742
    %v744 = vadd.f32 %v743, 1.0
    %v745 = vmul.f32 %v744, 0.5
    %v746 = vmul.f32 %v733, %v745
    %v747 = vpack.c.bf16 %v746, %v746
    %v748 = vld [vmem:[#allocation9] sm:$0xf]
    %v749 = vld [vmem:[#allocation9 + $0x4] sm:$0xf]
    %v750 = vld [vmem:[#allocation9 + $0x8] sm:$0xf]
    %v751 = vld [vmem:[#allocation9 + $0xc] sm:$0xf]
    %v752 = vld [vmem:[#allocation9 + $0x10] sm:$0xf]
    %v753 = vld [vmem:[#allocation9 + $0x14] sm:$0xf]
    %v754 = vld [vmem:[#allocation9 + $0x18] sm:$0xf]
    %v755 = vld [vmem:[#allocation9 + $0x1c] sm:$0xf]
    %v756 = vld [vmem:[#allocation9 + $0x20] sm:$0xf]
    %v757 = vld [vmem:[#allocation9 + $0x24] sm:$0xf]
    %v758 = vld [vmem:[#allocation9 + $0x28] sm:$0xf]
    %v759 = vld [vmem:[#allocation9 + $0x2c] sm:$0xf]
    %v760 = vld [vmem:[#allocation9 + $0x30] sm:$0xf]
    %v761 = vld [vmem:[#allocation9 + $0x34] sm:$0xf]
    %v762 = vld [vmem:[#allocation9 + $0x38] sm:$0xf]
    %v763 = vld [vmem:[#allocation9 + $0x3c] sm:$0xf]
    %v780 = vunpack.c.l.b16 %v748
    %v781 = vunpack.c.l.b16 %v749
    %v782 = vunpack.c.l.b16 %v750
    %v783 = vunpack.c.l.b16 %v751
    %v784 = vunpack.c.l.b16 %v752
    %v785 = vunpack.c.l.b16 %v753
    %v786 = vunpack.c.l.b16 %v754
    %v787 = vunpack.c.l.b16 %v755
    %v788 = vunpack.c.l.b16 %v756
    %v789 = vunpack.c.l.b16 %v757
    %v790 = vunpack.c.l.b16 %v758
    %v791 = vunpack.c.l.b16 %v759
    %v792 = vunpack.c.l.b16 %v760
    %v793 = vunpack.c.l.b16 %v761
    %v794 = vunpack.c.l.b16 %v762
    %v795 = vunpack.c.l.b16 %v763
    %v796 = vpack.c.b16 %v781, %v780
    %v797 = vpack.c.b16 %v783, %v782
    %v798 = vpack.c.b16 %v785, %v784
    %v799 = vpack.c.b16 %v787, %v786
    %v800 = vpack.c.b16 %v789, %v788
    %v801 = vpack.c.b16 %v791, %v790
    %v802 = vpack.c.b16 %v793, %v792
    %v803 = vpack.c.b16 %v795, %v794
    %812 = vmatprep.subr.bf16.mxu0 0
    %813 = vmatpush1.bf16.msra.mxu0 %v796
    %814 = vmatprep.subr.bf16.mxu0 0
    %815 = vmatpush1.bf16.msra.mxu0 %v797
    %816 = vmatprep.subr.bf16.mxu0 0
    %817 = vmatpush1.bf16.msra.mxu0 %v798
    %818 = vmatprep.subr.bf16.mxu0 0
    %819 = vmatpush1.bf16.msra.mxu0 %v799
    %820 = vmatprep.subr.bf16.mxu0 0
    %821 = vmatpush1.bf16.msra.mxu0 %v800
    %822 = vmatprep.subr.bf16.mxu0 0
    %823 = vmatpush1.bf16.msra.mxu0 %v801
    %824 = vmatprep.subr.bf16.mxu0 0
    %825 = vmatpush1.bf16.msra.mxu0 %v802
    %826 = vmatprep.subr.bf16.mxu0 0
    %827 = vmatpush1.bf16.msra.mxu0 %v803
    %828 = vmatprep.subr.bf16.mxu0 0
    %829 = vmatpush1.bf16.msra.mxu0 0
    %830 = vmatprep.subr.bf16.mxu0 0
    %831 = vmatpush1.bf16.msra.mxu0 0
    %832 = vmatprep.subr.bf16.mxu0 0
    %833 = vmatpush1.bf16.msra.mxu0 0
    %834 = vmatprep.subr.bf16.mxu0 0
    %835 = vmatpush1.bf16.msra.mxu0 0
    %836 = vmatprep.subr.bf16.mxu0 0
    %837 = vmatpush1.bf16.msra.mxu0 0
    %838 = vmatprep.subr.bf16.mxu0 0
    %839 = vmatpush1.bf16.msra.mxu0 0
    %840 = vmatprep.subr.bf16.mxu0 0
    %841 = vmatpush1.bf16.msra.mxu0 0
    %842 = vmatprep.subr.bf16.mxu0 0
    %843 = vmatpush1.bf16.msra.mxu0 0
    %844 = vmatprep.mubr.bf16.mxu0 0
    %845 = vmatmul.mubr.bf16.gmra.mrb[0].mxu0 %v747
    %v846 = vpop.f32.mrb[0].mxu0
    %v847 = vadd.f32 0.0, %v846
    %v848 = vpop.f32.mrb[0].mxu0
    %v849 = vpop.f32.mrb[0].mxu0
    %v850 = vpop.f32.mrb[0].mxu0
    %851 = vdwg.mxu0
    %v853 = vrot.slane %v847, 2
    %v855 = vsub.f32 %v847, %v853
    %v856 = vmul.f32 %v855, %v855
    %v857 = vsel %vm114, %v856, 0.0
    %858 = vadd.xlane.f32.xlu0 %v857
    %v859 = vpop.xlane.xlu0 %858
    %v860 = vrot.slane %v859, 4
    %v861 = vadd.f32 %v859, %v860
    %v862 = vrot.slane %v861, 2
    %v863 = vadd.f32 %v861, %v862
    %v864 = vrot.slane %v863, 1
    %v865 = vadd.f32 %v863, %v864
    %s866 = vtos %v865
    %v867 = vrcp.pop 256.0
    %s868 = vtos %v867
    %s869 = smul.f32 %s866, %s868
    %s870 = smul.f32 %s869, 100.0
    %s871 = sadd.f32 %s147, %s870
    %s872 = scalar_lea.smem [#allocation11], 0
    %873 = sst [smem:[%s872]] %s871
    // Predicated region
    $region38: #{tpu_custom_call.1} parent=1 // pred_check
      _
    $region39: #{tpu_custom_call.1} parent=1 // pred_check_branch
      %875 = sbr.rel (0) target = $region41
    $region40: #{tpu_custom_call.1} parent=1 // pred_region
      %s877 = ssub.s32 16, 16
      %878 = vsyncadd [#allocation5], %s877
      %881 = dma.smem_to_hbm [#allocation11], 16, %s5, [#allocation5]
    $region41: #{tpu_custom_call.1} parent=1 // pred_fallthru
      _
    // Predicated region
    $region42: #{tpu_custom_call.1} parent=1 // pred_check
      _
    $region43: #{tpu_custom_call.1} parent=1 // pred_check_branch
      %883 = sbr.rel (0) target = $region45
    $region44: #{tpu_custom_call.1} parent=1 // pred_region
      %884 = dma.done [#allocation5], 16
    $region45: #{tpu_custom_call.1} parent=1 // pred_fallthru
      _
    %885 = sfence
    %886 = vsyncpa [#allocation4], 1
    %887 = vsyncpa [#allocation7], 1
    %888 = vsyncpa [#allocation10], 1
    %889 = vsyncpa [#allocation5], 1

</llo_original>
